<compile_context>
chip_gen: v6e
topology: v6e:2x2x1
jax: 0.10.0
libtpu: 0.0.40
codegen_flags: <defaults>
</compile_context>

<pallas_src>
import functools

import jax
import jax.numpy as jnp
from jax.experimental import pallas as pl
from jax.experimental.pallas import tpu as pltpu


def lstm_kernel(x_ref, wx_ref, wh_ref, b_ref, wph_ref, bp_ref, out_ref,
                *, seq_length, batch_pad, hidden_dim):
    T, Bp, H = seq_length, batch_pad, hidden_dim

    # ---- Hoisted, non-recurrent input projection: ONE fused matmul over all
    # ---- T*Bp rows and all 4 gates (lane-dense (T*Bp, 4H) slab). -----------
    zx = (jnp.dot(x_ref[...], wx_ref[...],
                  preferred_element_type=jnp.float32)
          + b_ref[...])                                        # (T*Bp, 4H)

    wh_cat = wh_ref[...]                                       # (H, 4H)

    # Lane mask: gate g occupies lanes [0, H); i,f,o occupy the rest.
    # Hoisted once (not per step).
    lane = jax.lax.broadcasted_iota(jnp.int32, (Bp, 4 * H), 1)
    is_g = lane < H

    # ---- Sequential recurrence: static unrolled loop, state in values. -----
    # TODO(synk): hold Wh_cat in MXU staging regs across the T steps via
    # pltpu.matmul_push_rhs / matmul_acc_lhs; jnp.dot kept for robustness.
    h = jnp.zeros((Bp, H), jnp.float32)
    c = jnp.zeros((Bp, H), jnp.float32)
    for t in range(T):
        # Static sublane-aligned slice of the precomputed projection slab
        # + one full-lane-width recurrent matmul.
        z = (zx[t * Bp:(t + 1) * Bp, :]
             + jnp.dot(h, wh_cat, preferred_element_type=jnp.float32))  # (Bp,4H)

        # Two full-width EUP pushes + one VPU select, then static lane slices.
        act = jnp.where(is_g, jnp.tanh(z), jax.nn.sigmoid(z))
        g = act[:, 0:H]
        i = act[:, H:2 * H]
        f = act[:, 2 * H:3 * H]
        o = act[:, 3 * H:4 * H]

        c = g * i + c * f
        h = jnp.tanh(c) * o

    # ---- Final linear + log-softmax over the lane-dense padded class dim.
    # Padded Wph columns are zero and padded bias columns are -1e30, so
    # exp(padded) == 0 and real-class log-probs are exact.
    p = (jnp.dot(h, wph_ref[...], preferred_element_type=jnp.float32)
         + bp_ref[...])                                        # (Bp, Cp)
    out_ref[...] = jax.nn.log_softmax(p, axis=-1)


def lstm_forward(x_tokens, embedding, wx4, wh4, b4, wph, bp,
                 *, seq_length, hidden_dim, num_classes):
    """x_tokens: (B, T) int32; wx4: (4,D,H); wh4: (4,H,H); b4: (4,1,H)."""
    batch = x_tokens.shape[0]
    input_dim = embedding.shape[1]

    # Pad batch to a full f32 sublane tile and classes to a full lane tile.
    b_pad = ((batch + 7) // 8) * 8
    c_pad = ((num_classes + 127) // 128) * 128

    # Gate weights packed along the lane axis, gate order g, i, f, o.
    wx_cat = jnp.concatenate([wx4[k] for k in range(4)], axis=1)   # (D, 4H)
    wh_cat = jnp.concatenate([wh4[k] for k in range(4)], axis=1)   # (H, 4H)
    b_cat = jnp.concatenate([b4[k] for k in range(4)], axis=1)     # (1, 4H)

    # Glue: embedding gather, laid out time-major and flattened to (T*Bp, D)
    # so the in-kernel input projection is a single dense matmul.
    x_em = embedding[x_tokens]                        # (B, T, D)
    x_em = jnp.transpose(x_em, (1, 0, 2))             # (T, B, D)
    x_em = jnp.pad(x_em, ((0, 0), (0, b_pad - batch), (0, 0)))
    x_flat = x_em.reshape(seq_length * b_pad, input_dim)

    # Lane-dense final projection: zero-padded weight columns, -1e30 padded
    # bias columns (weights-only constants; no in-kernel masking needed).
    wph_p = jnp.pad(wph, ((0, 0), (0, c_pad - num_classes)))
    bp_p = jnp.concatenate(
        [bp, jnp.full((1, c_pad - num_classes), -1e30, jnp.float32)], axis=1)

    kernel = functools.partial(
        lstm_kernel,
        seq_length=seq_length,
        batch_pad=b_pad,
        hidden_dim=hidden_dim,
    )

    vmem = pl.BlockSpec(memory_space=pltpu.MemorySpace.VMEM)
    out_p = pl.pallas_call(
        kernel,
        out_shape=jax.ShapeDtypeStruct((b_pad, c_pad), jnp.float32),
        in_specs=[vmem] * 6,        # whole arrays resident in VMEM, one DMA each
        out_specs=vmem,
    )(x_flat, wx_cat, wh_cat, b_cat, wph_p, bp_p)

    # TODO(synk): for production sizes add a 'parallel' batch grid axis (v7x
    # dual-TC), pipeline x_flat over time-chunks with explicit
    # vmem_limit_bytes (64 MiB VMEM on v7x, 16 MiB default scoped on v5e),
    # and store weights in bf16; irrelevant at these toy shapes.
    return out_p[:batch, :num_classes]


def reference_forward(x_tokens, embedding, wx4, wh4, b4, wph, bp,
                      *, seq_length, hidden_dim):
    """Pure-JAX reference mirroring the PyTorch forward (gate order g,i,f,o)."""
    batch = x_tokens.shape[0]
    h = jnp.zeros((batch, hidden_dim), jnp.float32)
    c = jnp.zeros((batch, hidden_dim), jnp.float32)
    for t in range(seq_length):
        x_em = embedding[x_tokens[:, t]]
        g = jnp.tanh(x_em @ wx4[0] + h @ wh4[0] + b4[0])
        i = jax.nn.sigmoid(x_em @ wx4[1] + h @ wh4[1] + b4[1])
        f = jax.nn.sigmoid(x_em @ wx4[2] + h @ wh4[2] + b4[2])
        o = jax.nn.sigmoid(x_em @ wx4[3] + h @ wh4[3] + b4[3])
        c = g * i + c * f
        h = jnp.tanh(c) * o
    p = h @ wph + bp
    return jax.nn.log_softmax(p, axis=-1)


if __name__ == "__main__":
    # Small shapes consistent with the module's forward.
    seq_length = 8
    input_dim = 4
    hidden_dim = 32
    num_classes = 10
    batch_size = 2

    key = jax.random.PRNGKey(0)
    keys = jax.random.split(key, 12)

    # Deterministic kaiming-normal-like init (std = 1/sqrt(fan_in)).
    def kaiming(k, shape):
        fan_in = shape[-2]
        return jax.random.normal(k, shape, jnp.float32) / jnp.sqrt(fan_in)

    # Per-gate weights stacked along a leading axis; gate order: g, i, f, o.
    wx4 = jnp.stack([kaiming(keys[i], (input_dim, hidden_dim))
                     for i in range(4)], axis=0)          # (4, D, H)
    wh4 = jnp.stack([kaiming(keys[4 + i], (hidden_dim, hidden_dim))
                     for i in range(4)], axis=0)          # (4, H, H)
    b4 = jnp.zeros((4, 1, hidden_dim), jnp.float32)       # (4, 1, H)
    wph = kaiming(keys[8], (hidden_dim, num_classes))     # (H, C)
    bp = jnp.zeros((1, num_classes), jnp.float32)
    embedding = jax.random.normal(keys[9], (3, input_dim), jnp.float32)

    # Token input: (batch, seq_len), values in {0, 1, 2}.
    x_tokens = jax.random.randint(keys[10], (batch_size, seq_length), 0, 3,
                                  dtype=jnp.int32)

    out = lstm_forward(x_tokens, embedding, wx4, wh4, b4, wph, bp,
                       seq_length=seq_length, hidden_dim=hidden_dim,
                       num_classes=num_classes)
    out = jax.block_until_ready(out)

    ref = reference_forward(x_tokens, embedding, wx4, wh4, b4, wph, bp,
                            seq_length=seq_length, hidden_dim=hidden_dim)
    assert out.shape == (batch_size, num_classes)
    assert jnp.allclose(out, ref, atol=1e-5, rtol=1e-5)

    print("KERNEL_OK")
</pallas_src>

<mosaic_0001>
module attributes {stable_mosaic.version = 11 : i64} {
  func.func @lstm_kernel(%arg0: memref<64x4xf32, #tpu.memory_space<vmem>>, %arg1: memref<4x128xf32, #tpu.memory_space<vmem>>, %arg2: memref<32x128xf32, #tpu.memory_space<vmem>>, %arg3: memref<1x128xf32, #tpu.memory_space<vmem>>, %arg4: memref<32x128xf32, #tpu.memory_space<vmem>>, %arg5: memref<1x128xf32, #tpu.memory_space<vmem>>, %arg6: memref<8x128xf32, #tpu.memory_space<vmem>>) attributes {dimension_semantics = [], scalar_prefetch = 0 : i64, scratch_operands = 0 : i64, tpu.core_type = #tpu.core_type<tc>} {
    %c0 = arith.constant 0 : index
    %c0_0 = arith.constant 0 : index
    %0 = vector.load %arg0[%c0, %c0_0] : memref<64x4xf32, #tpu.memory_space<vmem>>, vector<64x4xf32>
    %c0_1 = arith.constant 0 : index
    %c0_2 = arith.constant 0 : index
    %1 = vector.load %arg1[%c0_1, %c0_2] : memref<4x128xf32, #tpu.memory_space<vmem>>, vector<4x128xf32>
    %cst = arith.constant dense<0.000000e+00> : vector<64x128xf32>
    %2 = tpu.matmul %0, %1, %cst {dimension_numbers = #tpu.dot_dimension_numbers<[1], [0], [0], [1], [0, 0, 1, 1], [], []>} : vector<64x4xf32>, vector<4x128xf32>, vector<64x128xf32> -> vector<64x128xf32>
    %c0_3 = arith.constant 0 : index
    %c0_4 = arith.constant 0 : index
    %3 = vector.load %arg3[%c0_3, %c0_4] : memref<1x128xf32, #tpu.memory_space<vmem>>, vector<1x128xf32>
    %4 = vector.broadcast %3 : vector<1x128xf32> to vector<64x128xf32>
    %5 = arith.addf %2, %4 : vector<64x128xf32>
    %c0_5 = arith.constant 0 : index
    %c0_6 = arith.constant 0 : index
    %6 = vector.load %arg2[%c0_5, %c0_6] : memref<32x128xf32, #tpu.memory_space<vmem>>, vector<32x128xf32>
    %7 = tpu.iota {dimensions = array<i32: 1>} : vector<8x128xi32>
    %c32_i32 = arith.constant 32 : i32
    %8 = vector.broadcast %c32_i32 : i32 to vector<8x128xi32>
    %9 = arith.cmpi slt, %7, %8 : vector<8x128xi32>
    %cst_7 = arith.constant 0.000000e+00 : f32
    %10 = vector.broadcast %cst_7 : f32 to vector<8x32xf32>
    %cst_8 = arith.constant 0.000000e+00 : f32
    %11 = vector.broadcast %cst_8 : f32 to vector<8x32xf32>
    %12 = vector.extract_strided_slice %5 {offsets = [0, 0], sizes = [8, 128], strides = [1, 1]} : vector<64x128xf32> to vector<8x128xf32>
    %cst_9 = arith.constant dense<0.000000e+00> : vector<8x128xf32>
    %13 = tpu.matmul %10, %6, %cst_9 {dimension_numbers = #tpu.dot_dimension_numbers<[1], [0], [0], [1], [0, 0, 1, 1], [], []>} : vector<8x32xf32>, vector<32x128xf32>, vector<8x128xf32> -> vector<8x128xf32>
    %14 = arith.addf %12, %13 : vector<8x128xf32>
    %15 = math.tanh %14 : vector<8x128xf32>
    %16 = arith.negf %14 : vector<8x128xf32>
    %17 = math.exp %16 : vector<8x128xf32>
    %cst_10 = arith.constant 1.000000e+00 : f32
    %18 = vector.broadcast %cst_10 : f32 to vector<8x128xf32>
    %19 = arith.addf %18, %17 : vector<8x128xf32>
    %20 = arith.divf %18, %19 : vector<8x128xf32>
    %21 = arith.select %9, %15, %20 : vector<8x128xi1>, vector<8x128xf32>
    %22 = vector.extract_strided_slice %21 {offsets = [0, 0], sizes = [8, 32], strides = [1, 1]} : vector<8x128xf32> to vector<8x32xf32>
    %23 = vector.extract_strided_slice %21 {offsets = [0, 32], sizes = [8, 32], strides = [1, 1]} : vector<8x128xf32> to vector<8x32xf32>
    %24 = vector.extract_strided_slice %21 {offsets = [0, 64], sizes = [8, 32], strides = [1, 1]} : vector<8x128xf32> to vector<8x32xf32>
    %25 = vector.extract_strided_slice %21 {offsets = [0, 96], sizes = [8, 32], strides = [1, 1]} : vector<8x128xf32> to vector<8x32xf32>
    %26 = arith.mulf %22, %23 : vector<8x32xf32>
    %27 = arith.mulf %11, %24 : vector<8x32xf32>
    %28 = arith.addf %26, %27 : vector<8x32xf32>
    %29 = math.tanh %28 : vector<8x32xf32>
    %30 = arith.mulf %29, %25 : vector<8x32xf32>
    %31 = vector.extract_strided_slice %5 {offsets = [8, 0], sizes = [8, 128], strides = [1, 1]} : vector<64x128xf32> to vector<8x128xf32>
    %cst_11 = arith.constant dense<0.000000e+00> : vector<8x128xf32>
    %32 = tpu.matmul %30, %6, %cst_11 {dimension_numbers = #tpu.dot_dimension_numbers<[1], [0], [0], [1], [0, 0, 1, 1], [], []>} : vector<8x32xf32>, vector<32x128xf32>, vector<8x128xf32> -> vector<8x128xf32>
    %33 = arith.addf %31, %32 : vector<8x128xf32>
    %34 = math.tanh %33 : vector<8x128xf32>
    %35 = arith.negf %33 : vector<8x128xf32>
    %36 = math.exp %35 : vector<8x128xf32>
    %cst_12 = arith.constant 1.000000e+00 : f32
    %37 = vector.broadcast %cst_12 : f32 to vector<8x128xf32>
    %38 = arith.addf %37, %36 : vector<8x128xf32>
    %39 = arith.divf %37, %38 : vector<8x128xf32>
    %40 = arith.select %9, %34, %39 : vector<8x128xi1>, vector<8x128xf32>
    %41 = vector.extract_strided_slice %40 {offsets = [0, 0], sizes = [8, 32], strides = [1, 1]} : vector<8x128xf32> to vector<8x32xf32>
    %42 = vector.extract_strided_slice %40 {offsets = [0, 32], sizes = [8, 32], strides = [1, 1]} : vector<8x128xf32> to vector<8x32xf32>
    %43 = vector.extract_strided_slice %40 {offsets = [0, 64], sizes = [8, 32], strides = [1, 1]} : vector<8x128xf32> to vector<8x32xf32>
    %44 = vector.extract_strided_slice %40 {offsets = [0, 96], sizes = [8, 32], strides = [1, 1]} : vector<8x128xf32> to vector<8x32xf32>
    %45 = arith.mulf %41, %42 : vector<8x32xf32>
    %46 = arith.mulf %28, %43 : vector<8x32xf32>
    %47 = arith.addf %45, %46 : vector<8x32xf32>
    %48 = math.tanh %47 : vector<8x32xf32>
    %49 = arith.mulf %48, %44 : vector<8x32xf32>
    %50 = vector.extract_strided_slice %5 {offsets = [16, 0], sizes = [8, 128], strides = [1, 1]} : vector<64x128xf32> to vector<8x128xf32>
    %cst_13 = arith.constant dense<0.000000e+00> : vector<8x128xf32>
    %51 = tpu.matmul %49, %6, %cst_13 {dimension_numbers = #tpu.dot_dimension_numbers<[1], [0], [0], [1], [0, 0, 1, 1], [], []>} : vector<8x32xf32>, vector<32x128xf32>, vector<8x128xf32> -> vector<8x128xf32>
    %52 = arith.addf %50, %51 : vector<8x128xf32>
    %53 = math.tanh %52 : vector<8x128xf32>
    %54 = arith.negf %52 : vector<8x128xf32>
    %55 = math.exp %54 : vector<8x128xf32>
    %cst_14 = arith.constant 1.000000e+00 : f32
    %56 = vector.broadcast %cst_14 : f32 to vector<8x128xf32>
    %57 = arith.addf %56, %55 : vector<8x128xf32>
    %58 = arith.divf %56, %57 : vector<8x128xf32>
    %59 = arith.select %9, %53, %58 : vector<8x128xi1>, vector<8x128xf32>
    %60 = vector.extract_strided_slice %59 {offsets = [0, 0], sizes = [8, 32], strides = [1, 1]} : vector<8x128xf32> to vector<8x32xf32>
    %61 = vector.extract_strided_slice %59 {offsets = [0, 32], sizes = [8, 32], strides = [1, 1]} : vector<8x128xf32> to vector<8x32xf32>
    %62 = vector.extract_strided_slice %59 {offsets = [0, 64], sizes = [8, 32], strides = [1, 1]} : vector<8x128xf32> to vector<8x32xf32>
    %63 = vector.extract_strided_slice %59 {offsets = [0, 96], sizes = [8, 32], strides = [1, 1]} : vector<8x128xf32> to vector<8x32xf32>
    %64 = arith.mulf %60, %61 : vector<8x32xf32>
    %65 = arith.mulf %47, %62 : vector<8x32xf32>
    %66 = arith.addf %64, %65 : vector<8x32xf32>
    %67 = math.tanh %66 : vector<8x32xf32>
    %68 = arith.mulf %67, %63 : vector<8x32xf32>
    %69 = vector.extract_strided_slice %5 {offsets = [24, 0], sizes = [8, 128], strides = [1, 1]} : vector<64x128xf32> to vector<8x128xf32>
    %cst_15 = arith.constant dense<0.000000e+00> : vector<8x128xf32>
    %70 = tpu.matmul %68, %6, %cst_15 {dimension_numbers = #tpu.dot_dimension_numbers<[1], [0], [0], [1], [0, 0, 1, 1], [], []>} : vector<8x32xf32>, vector<32x128xf32>, vector<8x128xf32> -> vector<8x128xf32>
    %71 = arith.addf %69, %70 : vector<8x128xf32>
    %72 = math.tanh %71 : vector<8x128xf32>
    %73 = arith.negf %71 : vector<8x128xf32>
    %74 = math.exp %73 : vector<8x128xf32>
    %cst_16 = arith.constant 1.000000e+00 : f32
    %75 = vector.broadcast %cst_16 : f32 to vector<8x128xf32>
    %76 = arith.addf %75, %74 : vector<8x128xf32>
    %77 = arith.divf %75, %76 : vector<8x128xf32>
    %78 = arith.select %9, %72, %77 : vector<8x128xi1>, vector<8x128xf32>
    %79 = vector.extract_strided_slice %78 {offsets = [0, 0], sizes = [8, 32], strides = [1, 1]} : vector<8x128xf32> to vector<8x32xf32>
    %80 = vector.extract_strided_slice %78 {offsets = [0, 32], sizes = [8, 32], strides = [1, 1]} : vector<8x128xf32> to vector<8x32xf32>
    %81 = vector.extract_strided_slice %78 {offsets = [0, 64], sizes = [8, 32], strides = [1, 1]} : vector<8x128xf32> to vector<8x32xf32>
    %82 = vector.extract_strided_slice %78 {offsets = [0, 96], sizes = [8, 32], strides = [1, 1]} : vector<8x128xf32> to vector<8x32xf32>
    %83 = arith.mulf %79, %80 : vector<8x32xf32>
    %84 = arith.mulf %66, %81 : vector<8x32xf32>
    %85 = arith.addf %83, %84 : vector<8x32xf32>
    %86 = math.tanh %85 : vector<8x32xf32>
    %87 = arith.mulf %86, %82 : vector<8x32xf32>
    %88 = vector.extract_strided_slice %5 {offsets = [32, 0], sizes = [8, 128], strides = [1, 1]} : vector<64x128xf32> to vector<8x128xf32>
    %cst_17 = arith.constant dense<0.000000e+00> : vector<8x128xf32>
    %89 = tpu.matmul %87, %6, %cst_17 {dimension_numbers = #tpu.dot_dimension_numbers<[1], [0], [0], [1], [0, 0, 1, 1], [], []>} : vector<8x32xf32>, vector<32x128xf32>, vector<8x128xf32> -> vector<8x128xf32>
    %90 = arith.addf %88, %89 : vector<8x128xf32>
    %91 = math.tanh %90 : vector<8x128xf32>
    %92 = arith.negf %90 : vector<8x128xf32>
    %93 = math.exp %92 : vector<8x128xf32>
    %cst_18 = arith.constant 1.000000e+00 : f32
    %94 = vector.broadcast %cst_18 : f32 to vector<8x128xf32>
    %95 = arith.addf %94, %93 : vector<8x128xf32>
    %96 = arith.divf %94, %95 : vector<8x128xf32>
    %97 = arith.select %9, %91, %96 : vector<8x128xi1>, vector<8x128xf32>
    %98 = vector.extract_strided_slice %97 {offsets = [0, 0], sizes = [8, 32], strides = [1, 1]} : vector<8x128xf32> to vector<8x32xf32>
    %99 = vector.extract_strided_slice %97 {offsets = [0, 32], sizes = [8, 32], strides = [1, 1]} : vector<8x128xf32> to vector<8x32xf32>
    %100 = vector.extract_strided_slice %97 {offsets = [0, 64], sizes = [8, 32], strides = [1, 1]} : vector<8x128xf32> to vector<8x32xf32>
    %101 = vector.extract_strided_slice %97 {offsets = [0, 96], sizes = [8, 32], strides = [1, 1]} : vector<8x128xf32> to vector<8x32xf32>
    %102 = arith.mulf %98, %99 : vector<8x32xf32>
    %103 = arith.mulf %85, %100 : vector<8x32xf32>
    %104 = arith.addf %102, %103 : vector<8x32xf32>
    %105 = math.tanh %104 : vector<8x32xf32>
    %106 = arith.mulf %105, %101 : vector<8x32xf32>
    %107 = vector.extract_strided_slice %5 {offsets = [40, 0], sizes = [8, 128], strides = [1, 1]} : vector<64x128xf32> to vector<8x128xf32>
    %cst_19 = arith.constant dense<0.000000e+00> : vector<8x128xf32>
    %108 = tpu.matmul %106, %6, %cst_19 {dimension_numbers = #tpu.dot_dimension_numbers<[1], [0], [0], [1], [0, 0, 1, 1], [], []>} : vector<8x32xf32>, vector<32x128xf32>, vector<8x128xf32> -> vector<8x128xf32>
    %109 = arith.addf %107, %108 : vector<8x128xf32>
    %110 = math.tanh %109 : vector<8x128xf32>
    %111 = arith.negf %109 : vector<8x128xf32>
    %112 = math.exp %111 : vector<8x128xf32>
    %cst_20 = arith.constant 1.000000e+00 : f32
    %113 = vector.broadcast %cst_20 : f32 to vector<8x128xf32>
    %114 = arith.addf %113, %112 : vector<8x128xf32>
    %115 = arith.divf %113, %114 : vector<8x128xf32>
    %116 = arith.select %9, %110, %115 : vector<8x128xi1>, vector<8x128xf32>
    %117 = vector.extract_strided_slice %116 {offsets = [0, 0], sizes = [8, 32], strides = [1, 1]} : vector<8x128xf32> to vector<8x32xf32>
    %118 = vector.extract_strided_slice %116 {offsets = [0, 32], sizes = [8, 32], strides = [1, 1]} : vector<8x128xf32> to vector<8x32xf32>
    %119 = vector.extract_strided_slice %116 {offsets = [0, 64], sizes = [8, 32], strides = [1, 1]} : vector<8x128xf32> to vector<8x32xf32>
    %120 = vector.extract_strided_slice %116 {offsets = [0, 96], sizes = [8, 32], strides = [1, 1]} : vector<8x128xf32> to vector<8x32xf32>
    %121 = arith.mulf %117, %118 : vector<8x32xf32>
    %122 = arith.mulf %104, %119 : vector<8x32xf32>
    %123 = arith.addf %121, %122 : vector<8x32xf32>
    %124 = math.tanh %123 : vector<8x32xf32>
    %125 = arith.mulf %124, %120 : vector<8x32xf32>
    %126 = vector.extract_strided_slice %5 {offsets = [48, 0], sizes = [8, 128], strides = [1, 1]} : vector<64x128xf32> to vector<8x128xf32>
    %cst_21 = arith.constant dense<0.000000e+00> : vector<8x128xf32>
    %127 = tpu.matmul %125, %6, %cst_21 {dimension_numbers = #tpu.dot_dimension_numbers<[1], [0], [0], [1], [0, 0, 1, 1], [], []>} : vector<8x32xf32>, vector<32x128xf32>, vector<8x128xf32> -> vector<8x128xf32>
    %128 = arith.addf %126, %127 : vector<8x128xf32>
    %129 = math.tanh %128 : vector<8x128xf32>
    %130 = arith.negf %128 : vector<8x128xf32>
    %131 = math.exp %130 : vector<8x128xf32>
    %cst_22 = arith.constant 1.000000e+00 : f32
    %132 = vector.broadcast %cst_22 : f32 to vector<8x128xf32>
    %133 = arith.addf %132, %131 : vector<8x128xf32>
    %134 = arith.divf %132, %133 : vector<8x128xf32>
    %135 = arith.select %9, %129, %134 : vector<8x128xi1>, vector<8x128xf32>
    %136 = vector.extract_strided_slice %135 {offsets = [0, 0], sizes = [8, 32], strides = [1, 1]} : vector<8x128xf32> to vector<8x32xf32>
    %137 = vector.extract_strided_slice %135 {offsets = [0, 32], sizes = [8, 32], strides = [1, 1]} : vector<8x128xf32> to vector<8x32xf32>
    %138 = vector.extract_strided_slice %135 {offsets = [0, 64], sizes = [8, 32], strides = [1, 1]} : vector<8x128xf32> to vector<8x32xf32>
    %139 = vector.extract_strided_slice %135 {offsets = [0, 96], sizes = [8, 32], strides = [1, 1]} : vector<8x128xf32> to vector<8x32xf32>
    %140 = arith.mulf %136, %137 : vector<8x32xf32>
    %141 = arith.mulf %123, %138 : vector<8x32xf32>
    %142 = arith.addf %140, %141 : vector<8x32xf32>
    %143 = math.tanh %142 : vector<8x32xf32>
    %144 = arith.mulf %143, %139 : vector<8x32xf32>
    %145 = vector.extract_strided_slice %5 {offsets = [56, 0], sizes = [8, 128], strides = [1, 1]} : vector<64x128xf32> to vector<8x128xf32>
    %cst_23 = arith.constant dense<0.000000e+00> : vector<8x128xf32>
    %146 = tpu.matmul %144, %6, %cst_23 {dimension_numbers = #tpu.dot_dimension_numbers<[1], [0], [0], [1], [0, 0, 1, 1], [], []>} : vector<8x32xf32>, vector<32x128xf32>, vector<8x128xf32> -> vector<8x128xf32>
    %147 = arith.addf %145, %146 : vector<8x128xf32>
    %148 = math.tanh %147 : vector<8x128xf32>
    %149 = arith.negf %147 : vector<8x128xf32>
    %150 = math.exp %149 : vector<8x128xf32>
    %cst_24 = arith.constant 1.000000e+00 : f32
    %151 = vector.broadcast %cst_24 : f32 to vector<8x128xf32>
    %152 = arith.addf %151, %150 : vector<8x128xf32>
    %153 = arith.divf %151, %152 : vector<8x128xf32>
    %154 = arith.select %9, %148, %153 : vector<8x128xi1>, vector<8x128xf32>
    %155 = vector.extract_strided_slice %154 {offsets = [0, 0], sizes = [8, 32], strides = [1, 1]} : vector<8x128xf32> to vector<8x32xf32>
    %156 = vector.extract_strided_slice %154 {offsets = [0, 32], sizes = [8, 32], strides = [1, 1]} : vector<8x128xf32> to vector<8x32xf32>
    %157 = vector.extract_strided_slice %154 {offsets = [0, 64], sizes = [8, 32], strides = [1, 1]} : vector<8x128xf32> to vector<8x32xf32>
    %158 = vector.extract_strided_slice %154 {offsets = [0, 96], sizes = [8, 32], strides = [1, 1]} : vector<8x128xf32> to vector<8x32xf32>
    %159 = arith.mulf %155, %156 : vector<8x32xf32>
    %160 = arith.mulf %142, %157 : vector<8x32xf32>
    %161 = arith.addf %159, %160 : vector<8x32xf32>
    %162 = math.tanh %161 : vector<8x32xf32>
    %163 = arith.mulf %162, %158 : vector<8x32xf32>
    %c0_25 = arith.constant 0 : index
    %c0_26 = arith.constant 0 : index
    %164 = vector.load %arg4[%c0_25, %c0_26] : memref<32x128xf32, #tpu.memory_space<vmem>>, vector<32x128xf32>
    %cst_27 = arith.constant dense<0.000000e+00> : vector<8x128xf32>
    %165 = tpu.matmul %163, %164, %cst_27 {dimension_numbers = #tpu.dot_dimension_numbers<[1], [0], [0], [1], [0, 0, 1, 1], [], []>} : vector<8x32xf32>, vector<32x128xf32>, vector<8x128xf32> -> vector<8x128xf32>
    %c0_28 = arith.constant 0 : index
    %c0_29 = arith.constant 0 : index
    %166 = vector.load %arg5[%c0_28, %c0_29] : memref<1x128xf32, #tpu.memory_space<vmem>>, vector<1x128xf32>
    %167 = vector.broadcast %166 : vector<1x128xf32> to vector<8x128xf32>
    %168 = arith.addf %165, %167 : vector<8x128xf32>
    %cst_30 = arith.constant dense<0xFF800000> : vector<8xf32>
    %169 = vector.multi_reduction <maximumf>, %168, %cst_30 [1] : vector<8x128xf32> to vector<8xf32>
    %cst_31 = arith.constant 0xFF800000 : f32
    %170 = vector.broadcast %cst_31 : f32 to vector<8xf32>
    %171 = arith.maximumf %170, %169 : vector<8xf32>
    %172 = vector.shape_cast %171 : vector<8xf32> to vector<8x1xf32>
    %173 = vector.broadcast %172 : vector<8x1xf32> to vector<8x128xf32>
    %174 = arith.subf %168, %173 : vector<8x128xf32>
    %175 = math.exp %174 : vector<8x128xf32>
    %cst_32 = arith.constant dense<0.000000e+00> : vector<8xf32>
    %176 = vector.multi_reduction <add>, %175, %cst_32 [1] : vector<8x128xf32> to vector<8xf32>
    %177 = vector.shape_cast %176 : vector<8xf32> to vector<8x1xf32>
    %178 = math.log %177 : vector<8x1xf32>
    %179 = vector.broadcast %178 : vector<8x1xf32> to vector<8x128xf32>
    %180 = arith.subf %174, %179 : vector<8x128xf32>
    %c0_33 = arith.constant 0 : index
    %c0_34 = arith.constant 0 : index
    %181 = vector.load %arg6[%c0_33, %c0_34] : memref<8x128xf32, #tpu.memory_space<vmem>>, vector<8x128xf32>
    tpu.vector_store %arg6[%c0_33, %c0_34], %180 {strides = array<i32>} : memref<8x128xf32, #tpu.memory_space<vmem>>, vector<8x128xf32>,
    return
  }
}

</mosaic_0001>

<llo_original>
// kernel: tpu_custom_call.1
$region0: #{tpu_custom_call.1}
  #allocation0 [shape = 'u32[]', space=smem, size = 0x4, offset = 0x4, fixed_abs, tag = 'smem constant byte address 0x4 - core index']
  #allocation1 [shape = 'u32[144,128]{1,0:T(1,128)}', space=vmem, size = 0x12000, scoped, tag = 'internal scratch']
  %s0 = inlined_call_operand.vmem [shape: f32[64,4], index: 0, kind: input, shape index: {}]
  %s1 = inlined_call_operand.vmem [shape: f32[4,128], index: 1, kind: input, shape index: {}]
  %s2 = inlined_call_operand.vmem [shape: f32[32,128], index: 2, kind: input, shape index: {}]
  %s3 = inlined_call_operand.vmem [shape: f32[1,128], index: 3, kind: input, shape index: {}]
  %s4 = inlined_call_operand.vmem [shape: f32[32,128], index: 4, kind: input, shape index: {}]
  %s5 = inlined_call_operand.vmem [shape: f32[1,128], index: 5, kind: input, shape index: {}]
  %s6 = inlined_call_operand.hbm [shape: f32[8,128], index: 6, kind: output, shape index: {}]
  %s7 = sld [smem:[#allocation0]]
  $region34: #{tpu_custom_call.1} parent=0
    _
  %s9 = ssub.s32 1, %s7
  %s10 = scalar_select 0, %s9, %s7
  $region1: #{tpu_custom_call.1} parent=0
    #allocation2 [shape = 'u8[4096]{0}', space=vmem, size = 0x1000, scoped, tag = 'output window, operand 0, single buffered']
    #allocation3 [shape = 's32[1]{0}', space=sflag, size = 0x4, scoped, tag = 'scoped memory for tpu_custom_call.1']
    %11 = vsyncpa [#allocation3], 0
    // Predicated region
    $region2: #{tpu_custom_call.1} parent=1 // pred_check
      _
    $region3: #{tpu_custom_call.1} parent=1 // pred_check_branch
      %13 = sbr.rel (0) target = $region5
    $region4: #{tpu_custom_call.1} parent=1 // pred_region
      _
    $region5: #{tpu_custom_call.1} parent=1 // pred_fallthru
      _
    // Predicated region
    $region6: #{tpu_custom_call.1} parent=1 // pred_check
      _
    $region7: #{tpu_custom_call.1} parent=1 // pred_check_branch
      %15 = sbr.rel (0) target = $region9
    $region8: #{tpu_custom_call.1} parent=1 // pred_region
      _
    $region9: #{tpu_custom_call.1} parent=1 // pred_fallthru
      _
    // Predicated region
    $region10: #{tpu_custom_call.1} parent=1 // pred_check
      _
    $region11: #{tpu_custom_call.1} parent=1 // pred_check_branch
      %17 = sbr.rel (0) target = $region13
    $region12: #{tpu_custom_call.1} parent=1 // pred_region
      _
    $region13: #{tpu_custom_call.1} parent=1 // pred_fallthru
      _
    // Predicated region
    $region14: #{tpu_custom_call.1} parent=1 // pred_check
      _
    $region15: #{tpu_custom_call.1} parent=1 // pred_check_branch
      %19 = sbr.rel (0) target = $region17
    $region16: #{tpu_custom_call.1} parent=1 // pred_region
      _
    $region17: #{tpu_custom_call.1} parent=1 // pred_fallthru
      _
    // Predicated region
    $region18: #{tpu_custom_call.1} parent=1 // pred_check
      _
    $region19: #{tpu_custom_call.1} parent=1 // pred_check_branch
      %21 = sbr.rel (0) target = $region21
    $region20: #{tpu_custom_call.1} parent=1 // pred_region
      _
    $region21: #{tpu_custom_call.1} parent=1 // pred_fallthru
      _
    // Predicated region
    $region22: #{tpu_custom_call.1} parent=1 // pred_check
      _
    $region23: #{tpu_custom_call.1} parent=1 // pred_check_branch
      %23 = sbr.rel (0) target = $region25
    $region24: #{tpu_custom_call.1} parent=1 // pred_region
      _
    $region25: #{tpu_custom_call.1} parent=1 // pred_fallthru
      _
    %v24 = vld [vmem:[%s0] sm:$0xff]
    %v25 = vld [vmem:[%s0 + $0x8] sm:$0xff]
    %v26 = vld [vmem:[%s0 + $0x10] sm:$0xff]
    %v27 = vld [vmem:[%s0 + $0x18] sm:$0xff]
    %v28 = vld [vmem:[%s0 + $0x20] sm:$0xff]
    %v29 = vld [vmem:[%s0 + $0x28] sm:$0xff]
    %v30 = vld [vmem:[%s0 + $0x30] sm:$0xff]
    %v31 = vld [vmem:[%s0 + $0x38] sm:$0xff]
    %v32 = vld [vmem:[%s1] sm:$0xf]
    %v33 = vld [vmem:[%s3] sm:$0x1]
    %v35 = vlaneseq
    %v36 = vshrl.u32 %v35, 7
    %v37 = vsub.s32 0, %v36
    %v38 = vrot.slane %v33, %v37
    %vm40 = vcmask 31744
    %v42 = vsel %vm40, %v24, 0
    %v45 = vsel %vm40, %v25, 0
    %v48 = vsel %vm40, %v26, 0
    %v51 = vsel %vm40, %v27, 0
    %v54 = vsel %vm40, %v28, 0
    %v57 = vsel %vm40, %v29, 0
    %v60 = vsel %vm40, %v30, 0
    %v63 = vsel %vm40, %v31, 0
    %vm65 = vcmask 1043456
    %v67 = vsel %vm65, %v32, 0
    %69 = vmatprep.subr.mxu0 0.0
    %70 = vmatpush1.msra.mxu0 0.0
    %71 = vmatprep.subr.mxu0 0.0
    %72 = vmatpush1.msra.mxu0 0.0
    %73 = vmatprep.subr.mxu0 0.0
    %74 = vmatpush1.msra.mxu0 0.0
    %75 = vmatprep.subr.mxu0 0.0
    %76 = vmatpush1.msra.mxu0 0.0
    %77 = vmatprep.subr.mxu0 0.0
    %78 = vmatpush1.msra.mxu0 0.0
    %79 = vmatprep.subr.mxu0 0.0
    %80 = vmatpush1.msra.mxu0 0.0
    %81 = vmatprep.subr.mxu0 0.0
    %82 = vmatpush1.msra.mxu0 0.0
    %83 = vmatprep.subr.mxu0 0.0
    %84 = vmatpush1.msra.mxu0 0.0
    %85 = vmatprep.subr.mxu0 0.0
    %86 = vmatpush1.msra.mxu0 0.0
    %87 = vmatprep.subr.mxu0 0.0
    %88 = vmatpush1.msra.mxu0 0.0
    %89 = vmatprep.subr.mxu0 0.0
    %90 = vmatpush1.msra.mxu0 0.0
    %91 = vmatprep.subr.mxu0 0.0
    %92 = vmatpush1.msra.mxu0 0.0
    %93 = vmatprep.subr.mxu0 0.0
    %94 = vmatpush1.msra.mxu0 0.0
    %95 = vmatprep.subr.mxu0 0.0
    %96 = vmatpush1.msra.mxu0 0.0
    %97 = vmatprep.subr.mxu0 0.0
    %98 = vmatpush1.msra.mxu0 0.0
    %99 = vmatprep.subr.mxu0 0.0
    %100 = vmatpush1.msra.mxu0 %v67
    %101 = vmatprep.subr.mxu0 0.0
    %102 = vmatpush2.msra.mxu0 0.0
    %103 = vmatprep.subr.mxu0 0.0
    %104 = vmatpush2.msra.mxu0 0.0
    %105 = vmatprep.subr.mxu0 0.0
    %106 = vmatpush2.msra.mxu0 0.0
    %107 = vmatprep.subr.mxu0 0.0
    %108 = vmatpush2.msra.mxu0 0.0
    %109 = vmatprep.subr.mxu0 0.0
    %110 = vmatpush2.msra.mxu0 0.0
    %111 = vmatprep.subr.mxu0 0.0
    %112 = vmatpush2.msra.mxu0 0.0
    %113 = vmatprep.subr.mxu0 0.0
    %114 = vmatpush2.msra.mxu0 0.0
    %115 = vmatprep.subr.mxu0 0.0
    %116 = vmatpush2.msra.mxu0 0.0
    %117 = vmatprep.subr.mxu0 0.0
    %118 = vmatpush2.msra.mxu0 0.0
    %119 = vmatprep.subr.mxu0 0.0
    %120 = vmatpush2.msra.mxu0 0.0
    %121 = vmatprep.subr.mxu0 0.0
    %122 = vmatpush2.msra.mxu0 0.0
    %123 = vmatprep.subr.mxu0 0.0
    %124 = vmatpush2.msra.mxu0 0.0
    %125 = vmatprep.subr.mxu0 0.0
    %126 = vmatpush2.msra.mxu0 0.0
    %127 = vmatprep.subr.mxu0 0.0
    %128 = vmatpush2.msra.mxu0 0.0
    %129 = vmatprep.subr.mxu0 0.0
    %130 = vmatpush2.msra.mxu0 0.0
    %131 = vmatprep.subr.mxu0 0.0
    %132 = vmatpush2.msra.mxu0 0.0
    %133 = vmatprep.mubr.f32.mxu0 0.0
    %134 = vmatmul.mubr.f32.gmra.mxu0 %v42
    %v135 = vpop.f32.mrf.mxu0
    %v136 = vadd.f32 %v38, %v135
    %v137 = vpop.f32.mrf.mxu0
    %138 = vmatprep.mubr.f32.mxu0 0.0
    %139 = vmatmul.mubr.f32.gmra.mxu0 %v45
    %v140 = vpop.f32.mrf.mxu0
    %v141 = vadd.f32 %v38, %v140
    %v142 = vpop.f32.mrf.mxu0
    %143 = vmatprep.mubr.f32.mxu0 0.0
    %144 = vmatmul.mubr.f32.gmra.mxu0 %v48
    %v145 = vpop.f32.mrf.mxu0
    %v146 = vadd.f32 %v38, %v145
    %v147 = vpop.f32.mrf.mxu0
    %148 = vmatprep.mubr.f32.mxu0 0.0
    %149 = vmatmul.mubr.f32.gmra.mxu0 %v51
    %v150 = vpop.f32.mrf.mxu0
    %v151 = vadd.f32 %v38, %v150
    %v152 = vpop.f32.mrf.mxu0
    %153 = vmatprep.mubr.f32.mxu0 0.0
    %154 = vmatmul.mubr.f32.gmra.mxu0 %v54
    %v155 = vpop.f32.mrf.mxu0
    %v156 = vadd.f32 %v38, %v155
    %v157 = vpop.f32.mrf.mxu0
    %158 = vmatprep.mubr.f32.mxu0 0.0
    %159 = vmatmul.mubr.f32.gmra.mxu0 %v57
    %v160 = vpop.f32.mrf.mxu0
    %v161 = vadd.f32 %v38, %v160
    %v162 = vpop.f32.mrf.mxu0
    %163 = vmatprep.mubr.f32.mxu0 0.0
    %164 = vmatmul.mubr.f32.gmra.mxu0 %v60
    %v165 = vpop.f32.mrf.mxu0
    %v166 = vadd.f32 %v38, %v165
    %v167 = vpop.f32.mrf.mxu0
    %168 = vmatprep.mubr.f32.mxu0 0.0
    %169 = vmatmul.mubr.f32.gmra.mxu0 %v63
    %v170 = vpop.f32.mrf.mxu0
    %v171 = vadd.f32 %v38, %v170
    %v172 = vpop.f32.mrf.mxu0
    %173 = vdwg.mxu0
    %v174 = vld [vmem:[%s2] sm:$0xff]
    %v175 = vld [vmem:[%s2 + $0x8] sm:$0xff]
    %v176 = vld [vmem:[%s2 + $0x10] sm:$0xff]
    %v177 = vld [vmem:[%s2 + $0x18] sm:$0xff]
    %v178 = vlaneseq
    %v179 = vand.u32 %v178, 127
    %vm180 = vcmp.lt.s32.totalorder %v179, 32
    %vm181 = vcmask 261120
    %v183 = vsel %vm181, 0.0, 0
    %185 = vmatprep.subr.mxu0 0.0
    %186 = vmatpush1.msra.mxu0 0.0
    %187 = vmatprep.subr.mxu0 0.0
    %188 = vmatpush1.msra.mxu0 0.0
    %189 = vmatprep.subr.mxu0 0.0
    %190 = vmatpush1.msra.mxu0 0.0
    %191 = vmatprep.subr.mxu0 0.0
    %192 = vmatpush1.msra.mxu0 0.0
    %193 = vmatprep.subr.mxu0 0.0
    %194 = vmatpush1.msra.mxu0 0.0
    %195 = vmatprep.subr.mxu0 0.0
    %196 = vmatpush1.msra.mxu0 0.0
    %197 = vmatprep.subr.mxu0 0.0
    %198 = vmatpush1.msra.mxu0 0.0
    %199 = vmatprep.subr.mxu0 0.0
    %200 = vmatpush1.msra.mxu0 0.0
    %201 = vmatprep.subr.mxu0 0.0
    %202 = vmatpush1.msra.mxu0 0.0
    %203 = vmatprep.subr.mxu0 0.0
    %204 = vmatpush1.msra.mxu0 0.0
    %205 = vmatprep.subr.mxu0 0.0
    %206 = vmatpush1.msra.mxu0 0.0
    %207 = vmatprep.subr.mxu0 0.0
    %208 = vmatpush1.msra.mxu0 0.0
    %209 = vmatprep.subr.mxu0 0.0
    %210 = vmatpush1.msra.mxu0 %v177
    %211 = vmatprep.subr.mxu0 0.0
    %212 = vmatpush1.msra.mxu0 %v176
    %213 = vmatprep.subr.mxu0 0.0
    %214 = vmatpush1.msra.mxu0 %v175
    %215 = vmatprep.subr.mxu0 0.0
    %216 = vmatpush1.msra.mxu0 %v174
    %217 = vmatprep.subr.mxu0 0.0
    %218 = vmatpush2.msra.mxu0 0.0
    %219 = vmatprep.subr.mxu0 0.0
    %220 = vmatpush2.msra.mxu0 0.0
    %221 = vmatprep.subr.mxu0 0.0
    %222 = vmatpush2.msra.mxu0 0.0
    %223 = vmatprep.subr.mxu0 0.0
    %224 = vmatpush2.msra.mxu0 0.0
    %225 = vmatprep.subr.mxu0 0.0
    %226 = vmatpush2.msra.mxu0 0.0
    %227 = vmatprep.subr.mxu0 0.0
    %228 = vmatpush2.msra.mxu0 0.0
    %229 = vmatprep.subr.mxu0 0.0
    %230 = vmatpush2.msra.mxu0 0.0
    %231 = vmatprep.subr.mxu0 0.0
    %232 = vmatpush2.msra.mxu0 0.0
    %233 = vmatprep.subr.mxu0 0.0
    %234 = vmatpush2.msra.mxu0 0.0
    %235 = vmatprep.subr.mxu0 0.0
    %236 = vmatpush2.msra.mxu0 0.0
    %237 = vmatprep.subr.mxu0 0.0
    %238 = vmatpush2.msra.mxu0 0.0
    %239 = vmatprep.subr.mxu0 0.0
    %240 = vmatpush2.msra.mxu0 0.0
    %241 = vmatprep.subr.mxu0 0.0
    %242 = vmatpush2.msra.mxu0 0.0
    %243 = vmatprep.subr.mxu0 0.0
    %244 = vmatpush2.msra.mxu0 0.0
    %245 = vmatprep.subr.mxu0 0.0
    %246 = vmatpush2.msra.mxu0 0.0
    %247 = vmatprep.subr.mxu0 0.0
    %248 = vmatpush2.msra.mxu0 0.0
    %249 = vmatprep.mubr.f32.mxu0 0.0
    %250 = vmatmul.mubr.f32.gmra.mxu0 %v183
    %v251 = vpop.f32.mrf.mxu0
    %v252 = vadd.f32 0.0, %v251
    %v253 = vpop.f32.mrf.mxu0
    %254 = vdwg.mxu0
    %v255 = vadd.f32 %v136, %v252
    %v256 = vtanh.pop %v255
    %v257 = vxor.u32 %v255, 2147483648
    %v258 = vmul.f32 %v257, 1.442695
    %v259 = vpow.pop %v258
    %v260 = vadd.f32 %v259, 1.0
    %v261 = vrcp.pop %v260
    %v262 = vmul.f32 1.0, %v261
    %v263 = vsel %vm180, %v256, %v262
    %265 = vrot.lane.b32.xlu0 %v263, 96
    %v266 = vpop.permute.xlu0 %265
    %v268 = vmul.f32 %v263, %v266
    %v269 = vmul.f32 %v263, 0.0
    %271 = vrot.lane.b32.xlu0 %v269, 64
    %v272 = vpop.permute.xlu0 %271
    %v274 = vadd.f32 %v268, %v272
    %v275 = vtanh.pop %v274
    %276 = vrot.lane.b32.xlu0 %v263, 32
    %v277 = vpop.permute.xlu0 %276
    %v279 = vmul.f32 %v275, %v277
    %v281 = vsel %vm181, %v279, 0
    %283 = vmatprep.subr.mxu0 0.0
    %284 = vmatpush1.msra.mxu0 0.0
    %285 = vmatprep.subr.mxu0 0.0
    %286 = vmatpush1.msra.mxu0 0.0
    %287 = vmatprep.subr.mxu0 0.0
    %288 = vmatpush1.msra.mxu0 0.0
    %289 = vmatprep.subr.mxu0 0.0
    %290 = vmatpush1.msra.mxu0 0.0
    %291 = vmatprep.subr.mxu0 0.0
    %292 = vmatpush1.msra.mxu0 0.0
    %293 = vmatprep.subr.mxu0 0.0
    %294 = vmatpush1.msra.mxu0 0.0
    %295 = vmatprep.subr.mxu0 0.0
    %296 = vmatpush1.msra.mxu0 0.0
    %297 = vmatprep.subr.mxu0 0.0
    %298 = vmatpush1.msra.mxu0 0.0
    %299 = vmatprep.subr.mxu0 0.0
    %300 = vmatpush1.msra.mxu0 0.0
    %301 = vmatprep.subr.mxu0 0.0
    %302 = vmatpush1.msra.mxu0 0.0
    %303 = vmatprep.subr.mxu0 0.0
    %304 = vmatpush1.msra.mxu0 0.0
    %305 = vmatprep.subr.mxu0 0.0
    %306 = vmatpush1.msra.mxu0 0.0
    %307 = vmatprep.subr.mxu0 0.0
    %308 = vmatpush1.msra.mxu0 %v177
    %309 = vmatprep.subr.mxu0 0.0
    %310 = vmatpush1.msra.mxu0 %v176
    %311 = vmatprep.subr.mxu0 0.0
    %312 = vmatpush1.msra.mxu0 %v175
    %313 = vmatprep.subr.mxu0 0.0
    %314 = vmatpush1.msra.mxu0 %v174
    %315 = vmatprep.subr.mxu0 0.0
    %316 = vmatpush2.msra.mxu0 0.0
    %317 = vmatprep.subr.mxu0 0.0
    %318 = vmatpush2.msra.mxu0 0.0
    %319 = vmatprep.subr.mxu0 0.0
    %320 = vmatpush2.msra.mxu0 0.0
    %321 = vmatprep.subr.mxu0 0.0
    %322 = vmatpush2.msra.mxu0 0.0
    %323 = vmatprep.subr.mxu0 0.0
    %324 = vmatpush2.msra.mxu0 0.0
    %325 = vmatprep.subr.mxu0 0.0
    %326 = vmatpush2.msra.mxu0 0.0
    %327 = vmatprep.subr.mxu0 0.0
    %328 = vmatpush2.msra.mxu0 0.0
    %329 = vmatprep.subr.mxu0 0.0
    %330 = vmatpush2.msra.mxu0 0.0
    %331 = vmatprep.subr.mxu0 0.0
    %332 = vmatpush2.msra.mxu0 0.0
    %333 = vmatprep.subr.mxu0 0.0
    %334 = vmatpush2.msra.mxu0 0.0
    %335 = vmatprep.subr.mxu0 0.0
    %336 = vmatpush2.msra.mxu0 0.0
    %337 = vmatprep.subr.mxu0 0.0
    %338 = vmatpush2.msra.mxu0 0.0
    %339 = vmatprep.subr.mxu0 0.0
    %340 = vmatpush2.msra.mxu0 0.0
    %341 = vmatprep.subr.mxu0 0.0
    %342 = vmatpush2.msra.mxu0 0.0
    %343 = vmatprep.subr.mxu0 0.0
    %344 = vmatpush2.msra.mxu0 0.0
    %345 = vmatprep.subr.mxu0 0.0
    %346 = vmatpush2.msra.mxu0 0.0
    %347 = vmatprep.mubr.f32.mxu0 0.0
    %348 = vmatmul.mubr.f32.gmra.mxu0 %v281
    %v349 = vpop.f32.mrf.mxu0
    %v350 = vadd.f32 0.0, %v349
    %v351 = vpop.f32.mrf.mxu0
    %352 = vdwg.mxu0
    %v353 = vadd.f32 %v141, %v350
    %v354 = vtanh.pop %v353
    %v355 = vxor.u32 %v353, 2147483648
    %v356 = vmul.f32 %v355, 1.442695
    %v357 = vpow.pop %v356
    %v358 = vadd.f32 %v357, 1.0
    %v359 = vrcp.pop %v358
    %v360 = vmul.f32 1.0, %v359
    %v361 = vsel %vm180, %v354, %v360
    %363 = vrot.lane.b32.xlu0 %v361, 96
    %v364 = vpop.permute.xlu0 %363
    %v366 = vmul.f32 %v361, %v364
    %367 = vrot.lane.b32.xlu0 %v361, 64
    %v368 = vpop.permute.xlu0 %367
    %v370 = vmul.f32 %v274, %v368
    %v371 = vadd.f32 %v366, %v370
    %v372 = vtanh.pop %v371
    %373 = vrot.lane.b32.xlu0 %v361, 32
    %v374 = vpop.permute.xlu0 %373
    %v376 = vmul.f32 %v372, %v374
    %v378 = vsel %vm181, %v376, 0
    %380 = vmatprep.subr.mxu0 0.0
    %381 = vmatpush1.msra.mxu0 0.0
    %382 = vmatprep.subr.mxu0 0.0
    %383 = vmatpush1.msra.mxu0 0.0
    %384 = vmatprep.subr.mxu0 0.0
    %385 = vmatpush1.msra.mxu0 0.0
    %386 = vmatprep.subr.mxu0 0.0
    %387 = vmatpush1.msra.mxu0 0.0
    %388 = vmatprep.subr.mxu0 0.0
    %389 = vmatpush1.msra.mxu0 0.0
    %390 = vmatprep.subr.mxu0 0.0
    %391 = vmatpush1.msra.mxu0 0.0
    %392 = vmatprep.subr.mxu0 0.0
    %393 = vmatpush1.msra.mxu0 0.0
    %394 = vmatprep.subr.mxu0 0.0
    %395 = vmatpush1.msra.mxu0 0.0
    %396 = vmatprep.subr.mxu0 0.0
    %397 = vmatpush1.msra.mxu0 0.0
    %398 = vmatprep.subr.mxu0 0.0
    %399 = vmatpush1.msra.mxu0 0.0
    %400 = vmatprep.subr.mxu0 0.0
    %401 = vmatpush1.msra.mxu0 0.0
    %402 = vmatprep.subr.mxu0 0.0
    %403 = vmatpush1.msra.mxu0 0.0
    %404 = vmatprep.subr.mxu0 0.0
    %405 = vmatpush1.msra.mxu0 %v177
    %406 = vmatprep.subr.mxu0 0.0
    %407 = vmatpush1.msra.mxu0 %v176
    %408 = vmatprep.subr.mxu0 0.0
    %409 = vmatpush1.msra.mxu0 %v175
    %410 = vmatprep.subr.mxu0 0.0
    %411 = vmatpush1.msra.mxu0 %v174
    %412 = vmatprep.subr.mxu0 0.0
    %413 = vmatpush2.msra.mxu0 0.0
    %414 = vmatprep.subr.mxu0 0.0
    %415 = vmatpush2.msra.mxu0 0.0
    %416 = vmatprep.subr.mxu0 0.0
    %417 = vmatpush2.msra.mxu0 0.0
    %418 = vmatprep.subr.mxu0 0.0
    %419 = vmatpush2.msra.mxu0 0.0
    %420 = vmatprep.subr.mxu0 0.0
    %421 = vmatpush2.msra.mxu0 0.0
    %422 = vmatprep.subr.mxu0 0.0
    %423 = vmatpush2.msra.mxu0 0.0
    %424 = vmatprep.subr.mxu0 0.0
    %425 = vmatpush2.msra.mxu0 0.0
    %426 = vmatprep.subr.mxu0 0.0
    %427 = vmatpush2.msra.mxu0 0.0
    %428 = vmatprep.subr.mxu0 0.0
    %429 = vmatpush2.msra.mxu0 0.0
    %430 = vmatprep.subr.mxu0 0.0
    %431 = vmatpush2.msra.mxu0 0.0
    %432 = vmatprep.subr.mxu0 0.0
    %433 = vmatpush2.msra.mxu0 0.0
    %434 = vmatprep.subr.mxu0 0.0
    %435 = vmatpush2.msra.mxu0 0.0
    %436 = vmatprep.subr.mxu0 0.0
    %437 = vmatpush2.msra.mxu0 0.0
    %438 = vmatprep.subr.mxu0 0.0
    %439 = vmatpush2.msra.mxu0 0.0
    %440 = vmatprep.subr.mxu0 0.0
    %441 = vmatpush2.msra.mxu0 0.0
    %442 = vmatprep.subr.mxu0 0.0
    %443 = vmatpush2.msra.mxu0 0.0
    %444 = vmatprep.mubr.f32.mxu0 0.0
    %445 = vmatmul.mubr.f32.gmra.mxu0 %v378
    %v446 = vpop.f32.mrf.mxu0
    %v447 = vadd.f32 0.0, %v446
    %v448 = vpop.f32.mrf.mxu0
    %449 = vdwg.mxu0
    %v450 = vadd.f32 %v146, %v447
    %v451 = vtanh.pop %v450
    %v452 = vxor.u32 %v450, 2147483648
    %v453 = vmul.f32 %v452, 1.442695
    %v454 = vpow.pop %v453
    %v455 = vadd.f32 %v454, 1.0
    %v456 = vrcp.pop %v455
    %v457 = vmul.f32 1.0, %v456
    %v458 = vsel %vm180, %v451, %v457
    %460 = vrot.lane.b32.xlu0 %v458, 96
    %v461 = vpop.permute.xlu0 %460
    %v463 = vmul.f32 %v458, %v461
    %464 = vrot.lane.b32.xlu0 %v458, 64
    %v465 = vpop.permute.xlu0 %464
    %v467 = vmul.f32 %v371, %v465
    %v468 = vadd.f32 %v463, %v467
    %v469 = vtanh.pop %v468
    %470 = vrot.lane.b32.xlu0 %v458, 32
    %v471 = vpop.permute.xlu0 %470
    %v473 = vmul.f32 %v469, %v471
    %v475 = vsel %vm181, %v473, 0
    %477 = vmatprep.subr.mxu0 0.0
    %478 = vmatpush1.msra.mxu0 0.0
    %479 = vmatprep.subr.mxu0 0.0
    %480 = vmatpush1.msra.mxu0 0.0
    %481 = vmatprep.subr.mxu0 0.0
    %482 = vmatpush1.msra.mxu0 0.0
    %483 = vmatprep.subr.mxu0 0.0
    %484 = vmatpush1.msra.mxu0 0.0
    %485 = vmatprep.subr.mxu0 0.0
    %486 = vmatpush1.msra.mxu0 0.0
    %487 = vmatprep.subr.mxu0 0.0
    %488 = vmatpush1.msra.mxu0 0.0
    %489 = vmatprep.subr.mxu0 0.0
    %490 = vmatpush1.msra.mxu0 0.0
    %491 = vmatprep.subr.mxu0 0.0
    %492 = vmatpush1.msra.mxu0 0.0
    %493 = vmatprep.subr.mxu0 0.0
    %494 = vmatpush1.msra.mxu0 0.0
    %495 = vmatprep.subr.mxu0 0.0
    %496 = vmatpush1.msra.mxu0 0.0
    %497 = vmatprep.subr.mxu0 0.0
    %498 = vmatpush1.msra.mxu0 0.0
    %499 = vmatprep.subr.mxu0 0.0
    %500 = vmatpush1.msra.mxu0 0.0
    %501 = vmatprep.subr.mxu0 0.0
    %502 = vmatpush1.msra.mxu0 %v177
    %503 = vmatprep.subr.mxu0 0.0
    %504 = vmatpush1.msra.mxu0 %v176
    %505 = vmatprep.subr.mxu0 0.0
    %506 = vmatpush1.msra.mxu0 %v175
    %507 = vmatprep.subr.mxu0 0.0
    %508 = vmatpush1.msra.mxu0 %v174
    %509 = vmatprep.subr.mxu0 0.0
    %510 = vmatpush2.msra.mxu0 0.0
    %511 = vmatprep.subr.mxu0 0.0
    %512 = vmatpush2.msra.mxu0 0.0
    %513 = vmatprep.subr.mxu0 0.0
    %514 = vmatpush2.msra.mxu0 0.0
    %515 = vmatprep.subr.mxu0 0.0
    %516 = vmatpush2.msra.mxu0 0.0
    %517 = vmatprep.subr.mxu0 0.0
    %518 = vmatpush2.msra.mxu0 0.0
    %519 = vmatprep.subr.mxu0 0.0
    %520 = vmatpush2.msra.mxu0 0.0
    %521 = vmatprep.subr.mxu0 0.0
    %522 = vmatpush2.msra.mxu0 0.0
    %523 = vmatprep.subr.mxu0 0.0
    %524 = vmatpush2.msra.mxu0 0.0
    %525 = vmatprep.subr.mxu0 0.0
    %526 = vmatpush2.msra.mxu0 0.0
    %527 = vmatprep.subr.mxu0 0.0
    %528 = vmatpush2.msra.mxu0 0.0
    %529 = vmatprep.subr.mxu0 0.0
    %530 = vmatpush2.msra.mxu0 0.0
    %531 = vmatprep.subr.mxu0 0.0
    %532 = vmatpush2.msra.mxu0 0.0
    %533 = vmatprep.subr.mxu0 0.0
    %534 = vmatpush2.msra.mxu0 0.0
    %535 = vmatprep.subr.mxu0 0.0
    %536 = vmatpush2.msra.mxu0 0.0
    %537 = vmatprep.subr.mxu0 0.0
    %538 = vmatpush2.msra.mxu0 0.0
    %539 = vmatprep.subr.mxu0 0.0
    %540 = vmatpush2.msra.mxu0 0.0
    %541 = vmatprep.mubr.f32.mxu0 0.0
    %542 = vmatmul.mubr.f32.gmra.mxu0 %v475
    %v543 = vpop.f32.mrf.mxu0
    %v544 = vadd.f32 0.0, %v543
    %v545 = vpop.f32.mrf.mxu0
    %546 = vdwg.mxu0
    %v547 = vadd.f32 %v151, %v544
    %v548 = vtanh.pop %v547
    %v549 = vxor.u32 %v547, 2147483648
    %v550 = vmul.f32 %v549, 1.442695
    %v551 = vpow.pop %v550
    %v552 = vadd.f32 %v551, 1.0
    %v553 = vrcp.pop %v552
    %v554 = vmul.f32 1.0, %v553
    %v555 = vsel %vm180, %v548, %v554
    %557 = vrot.lane.b32.xlu0 %v555, 96
    %v558 = vpop.permute.xlu0 %557
    %v560 = vmul.f32 %v555, %v558
    %561 = vrot.lane.b32.xlu0 %v555, 64
    %v562 = vpop.permute.xlu0 %561
    %v564 = vmul.f32 %v468, %v562
    %v565 = vadd.f32 %v560, %v564
    %v566 = vtanh.pop %v565
    %567 = vrot.lane.b32.xlu0 %v555, 32
    %v568 = vpop.permute.xlu0 %567
    %v570 = vmul.f32 %v566, %v568
    %v572 = vsel %vm181, %v570, 0
    %574 = vmatprep.subr.mxu0 0.0
    %575 = vmatpush1.msra.mxu0 0.0
    %576 = vmatprep.subr.mxu0 0.0
    %577 = vmatpush1.msra.mxu0 0.0
    %578 = vmatprep.subr.mxu0 0.0
    %579 = vmatpush1.msra.mxu0 0.0
    %580 = vmatprep.subr.mxu0 0.0
    %581 = vmatpush1.msra.mxu0 0.0
    %582 = vmatprep.subr.mxu0 0.0
    %583 = vmatpush1.msra.mxu0 0.0
    %584 = vmatprep.subr.mxu0 0.0
    %585 = vmatpush1.msra.mxu0 0.0
    %586 = vmatprep.subr.mxu0 0.0
    %587 = vmatpush1.msra.mxu0 0.0
    %588 = vmatprep.subr.mxu0 0.0
    %589 = vmatpush1.msra.mxu0 0.0
    %590 = vmatprep.subr.mxu0 0.0
    %591 = vmatpush1.msra.mxu0 0.0
    %592 = vmatprep.subr.mxu0 0.0
    %593 = vmatpush1.msra.mxu0 0.0
    %594 = vmatprep.subr.mxu0 0.0
    %595 = vmatpush1.msra.mxu0 0.0
    %596 = vmatprep.subr.mxu0 0.0
    %597 = vmatpush1.msra.mxu0 0.0
    %598 = vmatprep.subr.mxu0 0.0
    %599 = vmatpush1.msra.mxu0 %v177
    %600 = vmatprep.subr.mxu0 0.0
    %601 = vmatpush1.msra.mxu0 %v176
    %602 = vmatprep.subr.mxu0 0.0
    %603 = vmatpush1.msra.mxu0 %v175
    %604 = vmatprep.subr.mxu0 0.0
    %605 = vmatpush1.msra.mxu0 %v174
    %606 = vmatprep.subr.mxu0 0.0
    %607 = vmatpush2.msra.mxu0 0.0
    %608 = vmatprep.subr.mxu0 0.0
    %609 = vmatpush2.msra.mxu0 0.0
    %610 = vmatprep.subr.mxu0 0.0
    %611 = vmatpush2.msra.mxu0 0.0
    %612 = vmatprep.subr.mxu0 0.0
    %613 = vmatpush2.msra.mxu0 0.0
    %614 = vmatprep.subr.mxu0 0.0
    %615 = vmatpush2.msra.mxu0 0.0
    %616 = vmatprep.subr.mxu0 0.0
    %617 = vmatpush2.msra.mxu0 0.0
    %618 = vmatprep.subr.mxu0 0.0
    %619 = vmatpush2.msra.mxu0 0.0
    %620 = vmatprep.subr.mxu0 0.0
    %621 = vmatpush2.msra.mxu0 0.0
    %622 = vmatprep.subr.mxu0 0.0
    %623 = vmatpush2.msra.mxu0 0.0
    %624 = vmatprep.subr.mxu0 0.0
    %625 = vmatpush2.msra.mxu0 0.0
    %626 = vmatprep.subr.mxu0 0.0
    %627 = vmatpush2.msra.mxu0 0.0
    %628 = vmatprep.subr.mxu0 0.0
    %629 = vmatpush2.msra.mxu0 0.0
    %630 = vmatprep.subr.mxu0 0.0
    %631 = vmatpush2.msra.mxu0 0.0
    %632 = vmatprep.subr.mxu0 0.0
    %633 = vmatpush2.msra.mxu0 0.0
    %634 = vmatprep.subr.mxu0 0.0
    %635 = vmatpush2.msra.mxu0 0.0
    %636 = vmatprep.subr.mxu0 0.0
    %637 = vmatpush2.msra.mxu0 0.0
    %638 = vmatprep.mubr.f32.mxu0 0.0
    %639 = vmatmul.mubr.f32.gmra.mxu0 %v572
    %v640 = vpop.f32.mrf.mxu0
    %v641 = vadd.f32 0.0, %v640
    %v642 = vpop.f32.mrf.mxu0
    %643 = vdwg.mxu0
    %v644 = vadd.f32 %v156, %v641
    %v645 = vtanh.pop %v644
    %v646 = vxor.u32 %v644, 2147483648
    %v647 = vmul.f32 %v646, 1.442695
    %v648 = vpow.pop %v647
    %v649 = vadd.f32 %v648, 1.0
    %v650 = vrcp.pop %v649
    %v651 = vmul.f32 1.0, %v650
    %v652 = vsel %vm180, %v645, %v651
    %654 = vrot.lane.b32.xlu0 %v652, 96
    %v655 = vpop.permute.xlu0 %654
    %v657 = vmul.f32 %v652, %v655
    %658 = vrot.lane.b32.xlu0 %v652, 64
    %v659 = vpop.permute.xlu0 %658
    %v661 = vmul.f32 %v565, %v659
    %v662 = vadd.f32 %v657, %v661
    %v663 = vtanh.pop %v662
    %664 = vrot.lane.b32.xlu0 %v652, 32
    %v665 = vpop.permute.xlu0 %664
    %v667 = vmul.f32 %v663, %v665
    %v669 = vsel %vm181, %v667, 0
    %671 = vmatprep.subr.mxu0 0.0
    %672 = vmatpush1.msra.mxu0 0.0
    %673 = vmatprep.subr.mxu0 0.0
    %674 = vmatpush1.msra.mxu0 0.0
    %675 = vmatprep.subr.mxu0 0.0
    %676 = vmatpush1.msra.mxu0 0.0
    %677 = vmatprep.subr.mxu0 0.0
    %678 = vmatpush1.msra.mxu0 0.0
    %679 = vmatprep.subr.mxu0 0.0
    %680 = vmatpush1.msra.mxu0 0.0
    %681 = vmatprep.subr.mxu0 0.0
    %682 = vmatpush1.msra.mxu0 0.0
    %683 = vmatprep.subr.mxu0 0.0
    %684 = vmatpush1.msra.mxu0 0.0
    %685 = vmatprep.subr.mxu0 0.0
    %686 = vmatpush1.msra.mxu0 0.0
    %687 = vmatprep.subr.mxu0 0.0
    %688 = vmatpush1.msra.mxu0 0.0
    %689 = vmatprep.subr.mxu0 0.0
    %690 = vmatpush1.msra.mxu0 0.0
    %691 = vmatprep.subr.mxu0 0.0
    %692 = vmatpush1.msra.mxu0 0.0
    %693 = vmatprep.subr.mxu0 0.0
    %694 = vmatpush1.msra.mxu0 0.0
    %695 = vmatprep.subr.mxu0 0.0
    %696 = vmatpush1.msra.mxu0 %v177
    %697 = vmatprep.subr.mxu0 0.0
    %698 = vmatpush1.msra.mxu0 %v176
    %699 = vmatprep.subr.mxu0 0.0
    %700 = vmatpush1.msra.mxu0 %v175
    %701 = vmatprep.subr.mxu0 0.0
    %702 = vmatpush1.msra.mxu0 %v174
    %703 = vmatprep.subr.mxu0 0.0
    %704 = vmatpush2.msra.mxu0 0.0
    %705 = vmatprep.subr.mxu0 0.0
    %706 = vmatpush2.msra.mxu0 0.0
    %707 = vmatprep.subr.mxu0 0.0
    %708 = vmatpush2.msra.mxu0 0.0
    %709 = vmatprep.subr.mxu0 0.0
    %710 = vmatpush2.msra.mxu0 0.0
    %711 = vmatprep.subr.mxu0 0.0
    %712 = vmatpush2.msra.mxu0 0.0
    %713 = vmatprep.subr.mxu0 0.0
    %714 = vmatpush2.msra.mxu0 0.0
    %715 = vmatprep.subr.mxu0 0.0
    %716 = vmatpush2.msra.mxu0 0.0
    %717 = vmatprep.subr.mxu0 0.0
    %718 = vmatpush2.msra.mxu0 0.0
    %719 = vmatprep.subr.mxu0 0.0
    %720 = vmatpush2.msra.mxu0 0.0
    %721 = vmatprep.subr.mxu0 0.0
    %722 = vmatpush2.msra.mxu0 0.0
    %723 = vmatprep.subr.mxu0 0.0
    %724 = vmatpush2.msra.mxu0 0.0
    %725 = vmatprep.subr.mxu0 0.0
    %726 = vmatpush2.msra.mxu0 0.0
    %727 = vmatprep.subr.mxu0 0.0
    %728 = vmatpush2.msra.mxu0 0.0
    %729 = vmatprep.subr.mxu0 0.0
    %730 = vmatpush2.msra.mxu0 0.0
    %731 = vmatprep.subr.mxu0 0.0
    %732 = vmatpush2.msra.mxu0 0.0
    %733 = vmatprep.subr.mxu0 0.0
    %734 = vmatpush2.msra.mxu0 0.0
    %735 = vmatprep.mubr.f32.mxu0 0.0
    %736 = vmatmul.mubr.f32.gmra.mxu0 %v669
    %v737 = vpop.f32.mrf.mxu0
    %v738 = vadd.f32 0.0, %v737
    %v739 = vpop.f32.mrf.mxu0
    %740 = vdwg.mxu0
    %v741 = vadd.f32 %v161, %v738
    %v742 = vtanh.pop %v741
    %v743 = vxor.u32 %v741, 2147483648
    %v744 = vmul.f32 %v743, 1.442695
    %v745 = vpow.pop %v744
    %v746 = vadd.f32 %v745, 1.0
    %v747 = vrcp.pop %v746
    %v748 = vmul.f32 1.0, %v747
    %v749 = vsel %vm180, %v742, %v748
    %751 = vrot.lane.b32.xlu0 %v749, 96
    %v752 = vpop.permute.xlu0 %751
    %v754 = vmul.f32 %v749, %v752
    %755 = vrot.lane.b32.xlu0 %v749, 64
    %v756 = vpop.permute.xlu0 %755
    %v758 = vmul.f32 %v662, %v756
    %v759 = vadd.f32 %v754, %v758
    %v760 = vtanh.pop %v759
    %761 = vrot.lane.b32.xlu0 %v749, 32
    %v762 = vpop.permute.xlu0 %761
    %v764 = vmul.f32 %v760, %v762
    %v766 = vsel %vm181, %v764, 0
    %768 = vmatprep.subr.mxu0 0.0
    %769 = vmatpush1.msra.mxu0 0.0
    %770 = vmatprep.subr.mxu0 0.0
    %771 = vmatpush1.msra.mxu0 0.0
    %772 = vmatprep.subr.mxu0 0.0
    %773 = vmatpush1.msra.mxu0 0.0
    %774 = vmatprep.subr.mxu0 0.0
    %775 = vmatpush1.msra.mxu0 0.0
    %776 = vmatprep.subr.mxu0 0.0
    %777 = vmatpush1.msra.mxu0 0.0
    %778 = vmatprep.subr.mxu0 0.0
    %779 = vmatpush1.msra.mxu0 0.0
    %780 = vmatprep.subr.mxu0 0.0
    %781 = vmatpush1.msra.mxu0 0.0
    %782 = vmatprep.subr.mxu0 0.0
    %783 = vmatpush1.msra.mxu0 0.0
    %784 = vmatprep.subr.mxu0 0.0
    %785 = vmatpush1.msra.mxu0 0.0
    %786 = vmatprep.subr.mxu0 0.0
    %787 = vmatpush1.msra.mxu0 0.0
    %788 = vmatprep.subr.mxu0 0.0
    %789 = vmatpush1.msra.mxu0 0.0
    %790 = vmatprep.subr.mxu0 0.0
    %791 = vmatpush1.msra.mxu0 0.0
    %792 = vmatprep.subr.mxu0 0.0
    %793 = vmatpush1.msra.mxu0 %v177
    %794 = vmatprep.subr.mxu0 0.0
    %795 = vmatpush1.msra.mxu0 %v176
    %796 = vmatprep.subr.mxu0 0.0
    %797 = vmatpush1.msra.mxu0 %v175
    %798 = vmatprep.subr.mxu0 0.0
    %799 = vmatpush1.msra.mxu0 %v174
    %800 = vmatprep.subr.mxu0 0.0
    %801 = vmatpush2.msra.mxu0 0.0
    %802 = vmatprep.subr.mxu0 0.0
    %803 = vmatpush2.msra.mxu0 0.0
    %804 = vmatprep.subr.mxu0 0.0
    %805 = vmatpush2.msra.mxu0 0.0
    %806 = vmatprep.subr.mxu0 0.0
    %807 = vmatpush2.msra.mxu0 0.0
    %808 = vmatprep.subr.mxu0 0.0
    %809 = vmatpush2.msra.mxu0 0.0
    %810 = vmatprep.subr.mxu0 0.0
    %811 = vmatpush2.msra.mxu0 0.0
    %812 = vmatprep.subr.mxu0 0.0
    %813 = vmatpush2.msra.mxu0 0.0
    %814 = vmatprep.subr.mxu0 0.0
    %815 = vmatpush2.msra.mxu0 0.0
    %816 = vmatprep.subr.mxu0 0.0
    %817 = vmatpush2.msra.mxu0 0.0
    %818 = vmatprep.subr.mxu0 0.0
    %819 = vmatpush2.msra.mxu0 0.0
    %820 = vmatprep.subr.mxu0 0.0
    %821 = vmatpush2.msra.mxu0 0.0
    %822 = vmatprep.subr.mxu0 0.0
    %823 = vmatpush2.msra.mxu0 0.0
    %824 = vmatprep.subr.mxu0 0.0
    %825 = vmatpush2.msra.mxu0 0.0
    %826 = vmatprep.subr.mxu0 0.0
    %827 = vmatpush2.msra.mxu0 0.0
    %828 = vmatprep.subr.mxu0 0.0
    %829 = vmatpush2.msra.mxu0 0.0
    %830 = vmatprep.subr.mxu0 0.0
    %831 = vmatpush2.msra.mxu0 0.0
    %832 = vmatprep.mubr.f32.mxu0 0.0
    %833 = vmatmul.mubr.f32.gmra.mxu0 %v766
    %v834 = vpop.f32.mrf.mxu0
    %v835 = vadd.f32 0.0, %v834
    %v836 = vpop.f32.mrf.mxu0
    %837 = vdwg.mxu0
    %v838 = vadd.f32 %v166, %v835
    %v839 = vtanh.pop %v838
    %v840 = vxor.u32 %v838, 2147483648
    %v841 = vmul.f32 %v840, 1.442695
    %v842 = vpow.pop %v841
    %v843 = vadd.f32 %v842, 1.0
    %v844 = vrcp.pop %v843
    %v845 = vmul.f32 1.0, %v844
    %v846 = vsel %vm180, %v839, %v845
    %848 = vrot.lane.b32.xlu0 %v846, 96
    %v849 = vpop.permute.xlu0 %848
    %v851 = vmul.f32 %v846, %v849
    %852 = vrot.lane.b32.xlu0 %v846, 64
    %v853 = vpop.permute.xlu0 %852
    %v855 = vmul.f32 %v759, %v853
    %v856 = vadd.f32 %v851, %v855
    %v857 = vtanh.pop %v856
    %858 = vrot.lane.b32.xlu0 %v846, 32
    %v859 = vpop.permute.xlu0 %858
    %v861 = vmul.f32 %v857, %v859
    %v863 = vsel %vm181, %v861, 0
    %865 = vmatprep.subr.mxu0 0.0
    %866 = vmatpush1.msra.mxu0 0.0
    %867 = vmatprep.subr.mxu0 0.0
    %868 = vmatpush1.msra.mxu0 0.0
    %869 = vmatprep.subr.mxu0 0.0
    %870 = vmatpush1.msra.mxu0 0.0
    %871 = vmatprep.subr.mxu0 0.0
    %872 = vmatpush1.msra.mxu0 0.0
    %873 = vmatprep.subr.mxu0 0.0
    %874 = vmatpush1.msra.mxu0 0.0
    %875 = vmatprep.subr.mxu0 0.0
    %876 = vmatpush1.msra.mxu0 0.0
    %877 = vmatprep.subr.mxu0 0.0
    %878 = vmatpush1.msra.mxu0 0.0
    %879 = vmatprep.subr.mxu0 0.0
    %880 = vmatpush1.msra.mxu0 0.0
    %881 = vmatprep.subr.mxu0 0.0
    %882 = vmatpush1.msra.mxu0 0.0
    %883 = vmatprep.subr.mxu0 0.0
    %884 = vmatpush1.msra.mxu0 0.0
    %885 = vmatprep.subr.mxu0 0.0
    %886 = vmatpush1.msra.mxu0 0.0
    %887 = vmatprep.subr.mxu0 0.0
    %888 = vmatpush1.msra.mxu0 0.0
    %889 = vmatprep.subr.mxu0 0.0
    %890 = vmatpush1.msra.mxu0 %v177
    %891 = vmatprep.subr.mxu0 0.0
    %892 = vmatpush1.msra.mxu0 %v176
    %893 = vmatprep.subr.mxu0 0.0
    %894 = vmatpush1.msra.mxu0 %v175
    %895 = vmatprep.subr.mxu0 0.0
    %896 = vmatpush1.msra.mxu0 %v174
    %897 = vmatprep.subr.mxu0 0.0
    %898 = vmatpush2.msra.mxu0 0.0
    %899 = vmatprep.subr.mxu0 0.0
    %900 = vmatpush2.msra.mxu0 0.0
    %901 = vmatprep.subr.mxu0 0.0
    %902 = vmatpush2.msra.mxu0 0.0
    %903 = vmatprep.subr.mxu0 0.0
    %904 = vmatpush2.msra.mxu0 0.0
    %905 = vmatprep.subr.mxu0 0.0
    %906 = vmatpush2.msra.mxu0 0.0
    %907 = vmatprep.subr.mxu0 0.0
    %908 = vmatpush2.msra.mxu0 0.0
    %909 = vmatprep.subr.mxu0 0.0
    %910 = vmatpush2.msra.mxu0 0.0
    %911 = vmatprep.subr.mxu0 0.0
    %912 = vmatpush2.msra.mxu0 0.0
    %913 = vmatprep.subr.mxu0 0.0
    %914 = vmatpush2.msra.mxu0 0.0
    %915 = vmatprep.subr.mxu0 0.0
    %916 = vmatpush2.msra.mxu0 0.0
    %917 = vmatprep.subr.mxu0 0.0
    %918 = vmatpush2.msra.mxu0 0.0
    %919 = vmatprep.subr.mxu0 0.0
    %920 = vmatpush2.msra.mxu0 0.0
    %921 = vmatprep.subr.mxu0 0.0
    %922 = vmatpush2.msra.mxu0 0.0
    %923 = vmatprep.subr.mxu0 0.0
    %924 = vmatpush2.msra.mxu0 0.0
    %925 = vmatprep.subr.mxu0 0.0
    %926 = vmatpush2.msra.mxu0 0.0
    %927 = vmatprep.subr.mxu0 0.0
    %928 = vmatpush2.msra.mxu0 0.0
    %929 = vmatprep.mubr.f32.mxu0 0.0
    %930 = vmatmul.mubr.f32.gmra.mxu0 %v863
    %v931 = vpop.f32.mrf.mxu0
    %v932 = vadd.f32 0.0, %v931
    %v933 = vpop.f32.mrf.mxu0
    %934 = vdwg.mxu0
    %v935 = vadd.f32 %v171, %v932
    %v936 = vtanh.pop %v935
    %v937 = vxor.u32 %v935, 2147483648
    %v938 = vmul.f32 %v937, 1.442695
    %v939 = vpow.pop %v938
    %v940 = vadd.f32 %v939, 1.0
    %v941 = vrcp.pop %v940
    %v942 = vmul.f32 1.0, %v941
    %v943 = vsel %vm180, %v936, %v942
    %945 = vrot.lane.b32.xlu0 %v943, 96
    %v946 = vpop.permute.xlu0 %945
    %v948 = vmul.f32 %v943, %v946
    %949 = vrot.lane.b32.xlu0 %v943, 64
    %v950 = vpop.permute.xlu0 %949
    %v952 = vmul.f32 %v856, %v950
    %v953 = vadd.f32 %v948, %v952
    %v954 = vtanh.pop %v953
    %955 = vrot.lane.b32.xlu0 %v943, 32
    %v956 = vpop.permute.xlu0 %955
    %v958 = vmul.f32 %v954, %v956
    %v959 = vld [vmem:[%s4] sm:$0xff]
    %v960 = vld [vmem:[%s4 + $0x8] sm:$0xff]
    %v961 = vld [vmem:[%s4 + $0x10] sm:$0xff]
    %v962 = vld [vmem:[%s4 + $0x18] sm:$0xff]
    %v963 = vld [vmem:[%s5] sm:$0x1]
    %v965 = vlaneseq
    %v966 = vshrl.u32 %v965, 7
    %v967 = vsub.s32 0, %v966
    %v968 = vrot.slane %v963, %v967
    %v971 = vsel %vm181, %v958, 0
    %973 = vmatprep.subr.mxu0 0.0
    %974 = vmatpush1.msra.mxu0 0.0
    %975 = vmatprep.subr.mxu0 0.0
    %976 = vmatpush1.msra.mxu0 0.0
    %977 = vmatprep.subr.mxu0 0.0
    %978 = vmatpush1.msra.mxu0 0.0
    %979 = vmatprep.subr.mxu0 0.0
    %980 = vmatpush1.msra.mxu0 0.0
    %981 = vmatprep.subr.mxu0 0.0
    %982 = vmatpush1.msra.mxu0 0.0
    %983 = vmatprep.subr.mxu0 0.0
    %984 = vmatpush1.msra.mxu0 0.0
    %985 = vmatprep.subr.mxu0 0.0
    %986 = vmatpush1.msra.mxu0 0.0
    %987 = vmatprep.subr.mxu0 0.0
    %988 = vmatpush1.msra.mxu0 0.0
    %989 = vmatprep.subr.mxu0 0.0
    %990 = vmatpush1.msra.mxu0 0.0
    %991 = vmatprep.subr.mxu0 0.0
    %992 = vmatpush1.msra.mxu0 0.0
    %993 = vmatprep.subr.mxu0 0.0
    %994 = vmatpush1.msra.mxu0 0.0
    %995 = vmatprep.subr.mxu0 0.0
    %996 = vmatpush1.msra.mxu0 0.0
    %997 = vmatprep.subr.mxu0 0.0
    %998 = vmatpush1.msra.mxu0 %v962
    %999 = vmatprep.subr.mxu0 0.0
    %1000 = vmatpush1.msra.mxu0 %v961
    %1001 = vmatprep.subr.mxu0 0.0
    %1002 = vmatpush1.msra.mxu0 %v960
    %1003 = vmatprep.subr.mxu0 0.0
    %1004 = vmatpush1.msra.mxu0 %v959
    %1005 = vmatprep.subr.mxu0 0.0
    %1006 = vmatpush2.msra.mxu0 0.0
    %1007 = vmatprep.subr.mxu0 0.0
    %1008 = vmatpush2.msra.mxu0 0.0
    %1009 = vmatprep.subr.mxu0 0.0
    %1010 = vmatpush2.msra.mxu0 0.0
    %1011 = vmatprep.subr.mxu0 0.0
    %1012 = vmatpush2.msra.mxu0 0.0
    %1013 = vmatprep.subr.mxu0 0.0
    %1014 = vmatpush2.msra.mxu0 0.0
    %1015 = vmatprep.subr.mxu0 0.0
    %1016 = vmatpush2.msra.mxu0 0.0
    %1017 = vmatprep.subr.mxu0 0.0
    %1018 = vmatpush2.msra.mxu0 0.0
    %1019 = vmatprep.subr.mxu0 0.0
    %1020 = vmatpush2.msra.mxu0 0.0
    %1021 = vmatprep.subr.mxu0 0.0
    %1022 = vmatpush2.msra.mxu0 0.0
    %1023 = vmatprep.subr.mxu0 0.0
    %1024 = vmatpush2.msra.mxu0 0.0
    %1025 = vmatprep.subr.mxu0 0.0
    %1026 = vmatpush2.msra.mxu0 0.0
    %1027 = vmatprep.subr.mxu0 0.0
    %1028 = vmatpush2.msra.mxu0 0.0
    %1029 = vmatprep.subr.mxu0 0.0
    %1030 = vmatpush2.msra.mxu0 0.0
    %1031 = vmatprep.subr.mxu0 0.0
    %1032 = vmatpush2.msra.mxu0 0.0
    %1033 = vmatprep.subr.mxu0 0.0
    %1034 = vmatpush2.msra.mxu0 0.0
    %1035 = vmatprep.subr.mxu0 0.0
    %1036 = vmatpush2.msra.mxu0 0.0
    %1037 = vmatprep.mubr.f32.mxu0 0.0
    %1038 = vmatmul.mubr.f32.gmra.mxu0 %v971
    %v1039 = vpop.f32.mrf.mxu0
    %v1040 = vadd.f32 %v968, %v1039
    %v1041 = vpop.f32.mrf.mxu0
    %1042 = vdwg.mxu0
    %1043 = vmax.xlane.f32.xlu0 %v1040
    %v1044 = vpop.xlane.xlu0 %1043
    %v1045 = vsub.f32 %v1040, %v1044
    %v1046 = vmul.f32 %v1045, 1.442695
    %v1047 = vpow.pop %v1046
    %1048 = vadd.xlane.f32.xlu0 %v1047
    %v1049 = vpop.xlane.xlu0 %1048
    %v1050 = vlog2.pop %v1049
    %v1051 = vmul.f32 %v1050, 0.6931472
    %v1052 = vsub.f32 %v1045, %v1051
    %1053 = vst [vmem:[#allocation2] sm:$0xff] %v1052
    // Predicated region
    $region26: #{tpu_custom_call.1} parent=1 // pred_check
      _
    $region27: #{tpu_custom_call.1} parent=1 // pred_check_branch
      %1055 = sbr.rel (0) target = $region29
    $region28: #{tpu_custom_call.1} parent=1 // pred_region
      %s1057 = ssub.s32 128, 128
      %1058 = vsyncadd [#allocation3], %s1057
      %s1060 = sshll.u32 [#allocation2], 4
      %s1061 = int_to_ptr.vmem [resolvable:$true] %s1060
      %1063 = dma.vmem_to_hbm [thread:$0]  %s1061, 128, %s6, [#allocation3]
    $region29: #{tpu_custom_call.1} parent=1 // pred_fallthru
      _
    // Predicated region
    $region30: #{tpu_custom_call.1} parent=1 // pred_check
      _
    $region31: #{tpu_custom_call.1} parent=1 // pred_check_branch
      %1065 = sbr.rel (0) target = $region33
    $region32: #{tpu_custom_call.1} parent=1 // pred_region
      %1066 = dma.done [#allocation3], 128
    $region33: #{tpu_custom_call.1} parent=1 // pred_fallthru
      _
    %1067 = vsyncpa [#allocation3], 1

</llo_original>
